<compile_context>
chip_gen: v7x
topology: tpu7x:2x2x1
jax: 0.10.0
libtpu: 0.0.40
codegen_flags: <defaults>
</compile_context>

<pallas_src>
import jax
import jax.numpy as jnp
import numpy as np
from jax import lax
from jax.experimental import pallas as pl
from jax.experimental.pallas import tpu as pltpu

LANES = 128
CHUNK_ROWS = 256          # rows per fori_loop iteration (32 f32 vregs per stream)
MAX_BLOCK_ROWS = 8192     # 4 MiB f32 per input per grid step; 16384 also fits v7x VMEM
SMALL_ROWS = 2 * CHUNK_ROWS


def _round_up(x, m):
    return -(-x // m) * m


def _make_dice_partial_kernel(n, block_rows, chunk_rows, num_chunks, num_blocks):
    """Build the per-block partial-sum kernel, specialised on static sizes."""
    full_rows = n // LANES          # number of completely valid rows
    tail_lanes = n % LANES          # valid lanes in the (single) partial row
    needs_mask = (num_blocks * block_rows * LANES) != n

    def _accumulate(x_ref, t_ref, o_ref, masked):
        base_row = pl.program_id(0) * block_rows

        def body(c, carry):
            acc_pt, acc_p, acc_t = carry
            r0 = c * chunk_rows
            x = x_ref[pl.ds(r0, chunk_rows), :].astype(jnp.float32)
            t = t_ref[pl.ds(r0, chunk_rows), :].astype(jnp.float32)
            p = jax.nn.sigmoid(x)                      # EUP, f32
            if masked:
                row_g = base_row + r0 + lax.broadcasted_iota(
                    jnp.int32, (chunk_rows, LANES), 0)
                valid = row_g < full_rows
                if tail_lanes:
                    lane = lax.broadcasted_iota(jnp.int32, (chunk_rows, LANES), 1)
                    valid = valid | ((row_g == full_rows) & (lane < tail_lanes))
                p = jnp.where(valid, p, 0.0)
                t = jnp.where(valid, t, 0.0)
            sub = chunk_rows // 8                      # static python int
            p3 = p.reshape(sub, 8, LANES)              # major-dim split: layout no-op
            t3 = t.reshape(sub, 8, LANES)
            # Reduce only over the leading (vreg-major) axis -> pure VALU, no XLU.
            return (acc_pt + jnp.sum(p3 * t3, axis=0),
                    acc_p + jnp.sum(p3, axis=0),
                    acc_t + jnp.sum(t3, axis=0))

        z = jnp.zeros((8, LANES), jnp.float32)
        unroll = True if num_chunks <= 4 else 2
        acc_pt, acc_p, acc_t = lax.fori_loop(0, num_chunks, body, (z, z, z),
                                             unroll=unroll)
        o_ref[0, 0] = acc_pt
        o_ref[0, 1] = acc_p
        o_ref[0, 2] = acc_t

    def kernel(x_ref, t_ref, o_ref):
        if not needs_mask:
            # Every block (including the last) is fully valid: no mask anywhere.
            _accumulate(x_ref, t_ref, o_ref, masked=False)
        elif num_blocks == 1:
            _accumulate(x_ref, t_ref, o_ref, masked=True)
        else:
            last = num_blocks - 1

            @pl.when(pl.program_id(0) != last)
            def _():
                _accumulate(x_ref, t_ref, o_ref, masked=False)

            @pl.when(pl.program_id(0) == last)
            def _():
                _accumulate(x_ref, t_ref, o_ref, masked=True)

    return kernel


def dice_loss(inputs, targets, smooth=1.0):
    """Pallas TPU implementation of DiceLoss.forward (returns scalar f32)."""
    x = jnp.asarray(inputs).reshape(-1)
    t = jnp.asarray(targets).reshape(-1)
    # Semantic promotion only: bool/int (and sub-16-bit float) inputs become f32.
    # Floating f32/bf16/f16 stream through in their native dtype (no wrapper cast).
    if (not jnp.issubdtype(x.dtype, jnp.floating)) or x.dtype.itemsize < 2:
        x = x.astype(jnp.float32)
    if (not jnp.issubdtype(t.dtype, jnp.floating)) or t.dtype.itemsize < 2:
        t = t.astype(jnp.float32)

    n = x.shape[0]
    if n == 0:
        return jnp.float32(0.0)   # dice = smooth/smooth = 1 -> loss = 0

    # Row alignment: 8 sublanes for 32-bit dtypes, 16 if any 16-bit dtype.
    row_align = 16 if min(x.dtype.itemsize, t.dtype.itemsize) == 2 else 8
    elem_align = row_align * LANES
    n_pad = _round_up(n, elem_align)
    if n_pad != n:
        # Only when n is not already (8|16)x128 aligned (rare for UNet outputs).
        # Padded values are masked out inside the kernel, so contents don't matter.
        x = jnp.pad(x, (0, n_pad - n))
        t = jnp.pad(t, (0, n_pad - n))
    rows = n_pad // LANES
    x2 = x.reshape(rows, LANES)
    t2 = t.reshape(rows, LANES)

    if rows <= SMALL_ROWS:
        block_rows = rows          # single full-extent block (always legal)
        chunk_rows = rows
    else:
        half = -(-rows // 2)       # aim for >= 2 blocks so v7x megacore has work on both TCs
        block_rows = min(MAX_BLOCK_ROWS, _round_up(half, CHUNK_ROWS))
        chunk_rows = CHUNK_ROWS
    num_chunks = block_rows // chunk_rows
    num_blocks = -(-rows // block_rows)

    in_bytes = rows * LANES * (x2.dtype.itemsize + t2.dtype.itemsize)
    out_bytes = num_blocks * 3 * 8 * LANES * 4
    block_bytes = block_rows * LANES * (x2.dtype.itemsize + t2.dtype.itemsize)
    vmem_limit = int(min(max(2 * block_bytes + (8 << 20), 16 << 20), 60 << 20))

    kernel = _make_dice_partial_kernel(n, block_rows, chunk_rows, num_chunks,
                                       num_blocks)

    partials = pl.pallas_call(
        kernel,
        out_shape=jax.ShapeDtypeStruct((num_blocks, 3, 8, LANES), jnp.float32),
        grid=(num_blocks,),
        in_specs=[
            pl.BlockSpec((block_rows, LANES), lambda i: (i, 0)),
            pl.BlockSpec((block_rows, LANES), lambda i: (i, 0)),
        ],
        out_specs=pl.BlockSpec((1, 3, 8, LANES), lambda i: (i, 0, 0, 0)),
        compiler_params=pltpu.CompilerParams(
            dimension_semantics=("parallel",),     # shards across both TCs on v7x
            vmem_limit_bytes=vmem_limit,
        ),
        cost_estimate=pl.CostEstimate(
            flops=5 * rows * LANES,
            transcendentals=rows * LANES,
            bytes_accessed=in_bytes + out_bytes,
        ),
    )(x2, t2)

    # Tiny final reduction + dice formula in plain JAX.
    sums = jnp.sum(partials, axis=(0, 2, 3))                  # (3,)
    inter, p_sum, t_sum = sums[0], sums[1], sums[2]
    dice = (2.0 * inter + smooth) / (p_sum + t_sum + smooth)
    return 1.0 - dice


def _dice_loss_ref(inputs, targets, smooth=1.0):
    p = jax.nn.sigmoid(jnp.asarray(inputs, jnp.float32)).reshape(-1)
    t = jnp.asarray(targets, jnp.float32).reshape(-1)
    inter = jnp.sum(p * t)
    dice = (2.0 * inter + smooth) / (jnp.sum(p) + jnp.sum(t) + smooth)
    return 1.0 - dice


if __name__ == "__main__":
    key = jax.random.PRNGKey(0)
    k1, k2 = jax.random.split(key)
    # Small shapes consistent with a UNet-style segmentation head: NCHW.
    x = jax.random.normal(k1, (2, 4, 16, 16), dtype=jnp.float32)            # logits
    t = (jax.random.uniform(k2, (2, 4, 16, 16)) > 0.5).astype(jnp.float32)  # binary targets

    loss = dice_loss(x, t, smooth=1.0)
    jax.block_until_ready(loss)

    ref = _dice_loss_ref(x, t, smooth=1.0)
    np.testing.assert_allclose(np.asarray(loss), np.asarray(ref), rtol=1e-5, atol=1e-6)

    print("KERNEL_OK")
</pallas_src>

<mosaic_0001>
module attributes {stable_mosaic.version = 11 : i64} {
  func.func @kernel(%arg0: i32, %arg1: memref<16x128xf32, #tpu.memory_space<vmem>>, %arg2: memref<16x128xf32, #tpu.memory_space<vmem>>, %arg3: memref<1x3x8x128xf32, #tpu.memory_space<vmem>>) attributes {dimension_semantics = [#tpu.dimension_semantics<parallel>], iteration_bounds = array<i64: 1>, scalar_prefetch = 0 : i64, scratch_operands = 0 : i64, tpu.core_type = #tpu.core_type<tc>, window_params = [{transform_indices = @transform_0, window_bounds = array<i64: 16, 128>}, {transform_indices = @transform_1, window_bounds = array<i64: 16, 128>}, {transform_indices = @transform_2, window_bounds = array<i64: 1, 3, 8, 128>}]} {
    %cst = arith.constant 0.000000e+00 : f32
    %0 = vector.broadcast %cst : f32 to vector<8x128xf32>
    %c0_i32 = arith.constant 0 : i32
    %c16_i32 = arith.constant 16 : i32
    %1 = arith.muli %c0_i32, %c16_i32 : i32
    %2 = arith.index_cast %1 : i32 to index
    %c0 = arith.constant 0 : index
    %3 = vector.load %arg1[%2, %c0] : memref<16x128xf32, #tpu.memory_space<vmem>>, vector<16x128xf32>
    %4 = arith.index_cast %1 : i32 to index
    %c0_0 = arith.constant 0 : index
    %5 = vector.load %arg2[%4, %c0_0] : memref<16x128xf32, #tpu.memory_space<vmem>>, vector<16x128xf32>
    %6 = arith.negf %3 : vector<16x128xf32>
    %7 = math.exp %6 : vector<16x128xf32>
    %cst_1 = arith.constant 1.000000e+00 : f32
    %8 = vector.broadcast %cst_1 : f32 to vector<16x128xf32>
    %9 = arith.addf %8, %7 : vector<16x128xf32>
    %10 = arith.divf %8, %9 : vector<16x128xf32>
    %11 = vector.shape_cast %10 : vector<16x128xf32> to vector<2x8x128xf32>
    %12 = vector.shape_cast %5 : vector<16x128xf32> to vector<2x8x128xf32>
    %13 = arith.mulf %11, %12 : vector<2x8x128xf32>
    %cst_2 = arith.constant dense<0.000000e+00> : vector<8x128xf32>
    %14 = vector.multi_reduction <add>, %13, %cst_2 [0] : vector<2x8x128xf32> to vector<8x128xf32>
    %15 = arith.addf %0, %14 : vector<8x128xf32>
    %cst_3 = arith.constant dense<0.000000e+00> : vector<8x128xf32>
    %16 = vector.multi_reduction <add>, %11, %cst_3 [0] : vector<2x8x128xf32> to vector<8x128xf32>
    %17 = arith.addf %0, %16 : vector<8x128xf32>
    %cst_4 = arith.constant dense<0.000000e+00> : vector<8x128xf32>
    %18 = vector.multi_reduction <add>, %12, %cst_4 [0] : vector<2x8x128xf32> to vector<8x128xf32>
    %19 = arith.addf %0, %18 : vector<8x128xf32>
    %c1_i32 = arith.constant 1 : i32
    %c0_5 = arith.constant 0 : index
    %c0_6 = arith.constant 0 : index
    %c0_7 = arith.constant 0 : index
    %c0_8 = arith.constant 0 : index
    %20 = vector.load %arg3[%c0_5, %c0_6, %c0_7, %c0_8] : memref<1x3x8x128xf32, #tpu.memory_space<vmem>>, vector<1x1x8x128xf32>
    %21 = vector.shape_cast %20 : vector<1x1x8x128xf32> to vector<8x128xf32>
    %22 = vector.shape_cast %15 : vector<8x128xf32> to vector<1x1x8x128xf32>
    tpu.vector_store %arg3[%c0_5, %c0_6, %c0_7, %c0_8], %22 {strides = array<i32>} : memref<1x3x8x128xf32, #tpu.memory_space<vmem>>, vector<1x1x8x128xf32>,
    %c0_9 = arith.constant 0 : index
    %c1 = arith.constant 1 : index
    %c0_10 = arith.constant 0 : index
    %c0_11 = arith.constant 0 : index
    %23 = vector.load %arg3[%c0_9, %c1, %c0_10, %c0_11] : memref<1x3x8x128xf32, #tpu.memory_space<vmem>>, vector<1x1x8x128xf32>
    %24 = vector.shape_cast %23 : vector<1x1x8x128xf32> to vector<8x128xf32>
    %25 = vector.shape_cast %17 : vector<8x128xf32> to vector<1x1x8x128xf32>
    tpu.vector_store %arg3[%c0_9, %c1, %c0_10, %c0_11], %25 {strides = array<i32>} : memref<1x3x8x128xf32, #tpu.memory_space<vmem>>, vector<1x1x8x128xf32>,
    %c0_12 = arith.constant 0 : index
    %c2 = arith.constant 2 : index
    %c0_13 = arith.constant 0 : index
    %c0_14 = arith.constant 0 : index
    %26 = vector.load %arg3[%c0_12, %c2, %c0_13, %c0_14] : memref<1x3x8x128xf32, #tpu.memory_space<vmem>>, vector<1x1x8x128xf32>
    %27 = vector.shape_cast %26 : vector<1x1x8x128xf32> to vector<8x128xf32>
    %28 = vector.shape_cast %19 : vector<8x128xf32> to vector<1x1x8x128xf32>
    tpu.vector_store %arg3[%c0_12, %c2, %c0_13, %c0_14], %28 {strides = array<i32>} : memref<1x3x8x128xf32, #tpu.memory_space<vmem>>, vector<1x1x8x128xf32>,
    return
  }
  func.func @transform_0(%arg0: i32) -> (i32, i32) {
    %c0_i32 = arith.constant 0 : i32
    %c0_i32_0 = arith.constant 0 : i32
    return %arg0, %c0_i32 : i32, i32
  }
  func.func @transform_1(%arg0: i32) -> (i32, i32) {
    %c0_i32 = arith.constant 0 : i32
    %c0_i32_0 = arith.constant 0 : i32
    return %arg0, %c0_i32 : i32, i32
  }
  func.func @transform_2(%arg0: i32) -> (i32, i32, i32, i32) {
    %c0_i32 = arith.constant 0 : i32
    %c0_i32_0 = arith.constant 0 : i32
    %c0_i32_1 = arith.constant 0 : i32
    %c0_i32_2 = arith.constant 0 : i32
    return %arg0, %c0_i32, %c0_i32_0, %c0_i32_1 : i32, i32, i32, i32
  }
}

</mosaic_0001>

<llo_original>
// kernel: tpu_custom_call.1
$region0: #{tpu_custom_call.1}
  #allocation0 [shape = 'u32[]', space=smem, size = 0x4, offset = 0x4, fixed_abs, tag = 'smem constant byte address 0x4 - core index']
  #allocation1 [shape = 'u32[144,128]{1,0:T(1,128)}', space=vmem, size = 0x12000, scoped, tag = 'internal scratch']
  %s0 = inlined_call_operand.hbm [shape: f32[16,128], index: 0, kind: input, shape index: {}]
  %s1 = inlined_call_operand.hbm [shape: f32[16,128], index: 1, kind: input, shape index: {}]
  %s2 = inlined_call_operand.hbm [shape: f32[1,3,8,128], index: 2, kind: output, shape index: {}]
  %s3 = sld [smem:[#allocation0]]
  $region26: #{tpu_custom_call.1} parent=0
    _
  %s5 = ssub.s32 1, %s3
  %s6 = scalar_select 0, %s5, %s3
  $region1: #{tpu_custom_call.1} parent=0
    #allocation2 [shape = 'u8[8192]{0}', space=vmem, size = 0x2000, scoped, tag = 'input window, operand 0, single buffered']
    #allocation3 [shape = 's32[1]{0}', space=sflag, size = 0x4, scoped, tag = 'scoped memory for tpu_custom_call.1']
    #allocation4 [shape = 's32[1]{0}', space=sflag, size = 0x4, scoped, tag = 'scoped memory for tpu_custom_call.1']
    #allocation5 [shape = 'u8[8192]{0}', space=vmem, size = 0x2000, scoped, tag = 'input window, operand 1, single buffered']
    #allocation6 [shape = 's32[1]{0}', space=sflag, size = 0x4, scoped, tag = 'scoped memory for tpu_custom_call.1']
    #allocation7 [shape = 'u8[12288]{0}', space=vmem, size = 0x3000, scoped, tag = 'output window, operand 0, single buffered']
    %7 = vsyncpa [#allocation3], 0
    %8 = vsyncpa [#allocation6], 0
    %9 = vsyncpa [#allocation4], 0
    // Predicated region
    $region2: #{tpu_custom_call.1} parent=1 // pred_check
      _
    $region3: #{tpu_custom_call.1} parent=1 // pred_check_branch
      %11 = sbr.rel (0) target = $region5
    $region4: #{tpu_custom_call.1} parent=1 // pred_region
      %s13 = ssub.s32 256, 256
      %14 = vsyncadd [#allocation3], %s13
      %s15 = sshll.u32 [#allocation2], 4
      %s16 = int_to_ptr.vmem [resolvable:$true] %s15
      %21 = dma.hbm_to_vmem [thread:$0]  %s0, 256, %s16, [#allocation3], 128, 128, 8
    $region5: #{tpu_custom_call.1} parent=1 // pred_fallthru
      _
    // Predicated region
    $region6: #{tpu_custom_call.1} parent=1 // pred_check
      _
    $region7: #{tpu_custom_call.1} parent=1 // pred_check_branch
      %23 = sbr.rel (0) target = $region9
    $region8: #{tpu_custom_call.1} parent=1 // pred_region
      %s25 = ssub.s32 256, 256
      %26 = vsyncadd [#allocation6], %s25
      %s27 = sshll.u32 [#allocation5], 4
      %s28 = int_to_ptr.vmem [resolvable:$true] %s27
      %33 = dma.hbm_to_vmem [thread:$0]  %s1, 256, %s28, [#allocation6], 128, 128, 8
    $region9: #{tpu_custom_call.1} parent=1 // pred_fallthru
      _
    // Predicated region
    $region10: #{tpu_custom_call.1} parent=1 // pred_check
      _
    $region11: #{tpu_custom_call.1} parent=1 // pred_check_branch
      %35 = sbr.rel (0) target = $region13
    $region12: #{tpu_custom_call.1} parent=1 // pred_region
      %36 = dma.done [#allocation3], 256
    $region13: #{tpu_custom_call.1} parent=1 // pred_fallthru
      _
    // Predicated region
    $region14: #{tpu_custom_call.1} parent=1 // pred_check
      _
    $region15: #{tpu_custom_call.1} parent=1 // pred_check_branch
      %38 = sbr.rel (0) target = $region17
    $region16: #{tpu_custom_call.1} parent=1 // pred_region
      %39 = dma.done [#allocation6], 256
    $region17: #{tpu_custom_call.1} parent=1 // pred_fallthru
      _
    %v40 = vld [vmem:[#allocation2] sm:$0xff]
    %v41 = vld [vmem:[#allocation2 + $0x8] sm:$0xff]
    %v42 = vld [vmem:[#allocation5] sm:$0xff]
    %v43 = vld [vmem:[#allocation5 + $0x8] sm:$0xff]
    %v44 = vxor.u32 %v40, 2147483648
    %v45 = vxor.u32 %v41, 2147483648
    %v46 = vmul.f32 %v44, 1.442695
    %v47 = vpow.pop %v46
    %v48 = vmul.f32 %v45, 1.442695
    %v49 = vpow.pop %v48
    %v50 = vadd.f32 %v47, 1.0
    %v51 = vadd.f32 %v49, 1.0
    %v52 = vrcp.pop %v50
    %v53 = vmul.f32 1.0, %v52
    %v54 = vrcp.pop %v51
    %v55 = vmul.f32 1.0, %v54
    %v56 = vmul.f32 %v53, %v42
    %v57 = vmul.f32 %v55, %v43
    %v58 = vadd.f32 %v56, %v57
    %v59 = vadd.f32 %v58, 0.0
    %v60 = vadd.f32 %v53, %v55
    %v61 = vadd.f32 %v60, 0.0
    %v62 = vadd.f32 %v42, %v43
    %v63 = vadd.f32 %v62, 0.0
    %64 = vst [vmem:[#allocation7] sm:$0xff] %v59
    %s65 = scalar_lea.vmem [#allocation7], 8
    %66 = vst [vmem:[%s65] sm:$0xff] %v61
    %s67 = scalar_lea.vmem [#allocation7], 16
    %68 = vst [vmem:[%s67] sm:$0xff] %v63
    // Predicated region
    $region18: #{tpu_custom_call.1} parent=1 // pred_check
      _
    $region19: #{tpu_custom_call.1} parent=1 // pred_check_branch
      %70 = sbr.rel (0) target = $region21
    $region20: #{tpu_custom_call.1} parent=1 // pred_region
      %s72 = ssub.s32 384, 384
      %73 = vsyncadd [#allocation4], %s72
      %s74 = sshll.u32 [#allocation7], 4
      %s75 = int_to_ptr.vmem [resolvable:$true] %s74
      %80 = dma.vmem_to_hbm [thread:$0]  %s75, 384, %s2, [#allocation4], 128, 128, 8
    $region21: #{tpu_custom_call.1} parent=1 // pred_fallthru
      _
    // Predicated region
    $region22: #{tpu_custom_call.1} parent=1 // pred_check
      _
    $region23: #{tpu_custom_call.1} parent=1 // pred_check_branch
      %82 = sbr.rel (0) target = $region25
    $region24: #{tpu_custom_call.1} parent=1 // pred_region
      %83 = dma.done [#allocation4], 384
    $region25: #{tpu_custom_call.1} parent=1 // pred_fallthru
      _
    %84 = vsyncpa [#allocation3], 1
    %85 = vsyncpa [#allocation6], 1
    %86 = vsyncpa [#allocation4], 1

</llo_original>
